<compile_context>
chip_gen: v7x
topology: tpu7x:2x2x1
jax: 0.10.0
libtpu: 0.0.40
codegen_flags: <defaults>
</compile_context>

<pallas_src>
import jax
import jax.numpy as jnp
from jax.experimental import pallas as pl
from jax.experimental.pallas import tpu as pltpu


# ---------------------------- Config (mirrors the torch Config) -------------
MODEL_D        = 512
PREFIX_LENGTH  = 16
LM_EMBED_V_DIM = MODEL_D // PREFIX_LENGTH      # 32
TARGET_M_DIM   = 768
CLIP_MAX_LEN   = 77
SEQ_LEN        = PREFIX_LENGTH + CLIP_MAX_LEN  # 93

OUT_DTYPE = jnp.bfloat16   # decoder inputs_embeds dtype (GPT-2 accepts bf16)


# ---------------------------- Kernel 1: lin_m_v ------------------------------
def _img_linear_kernel(x_ref, w_ref, b_ref, o_ref):
    # (B, 512) @ (512, 512) + (1, 512), f32 accumulate, bf16 out
    o_ref[...] = (
        jnp.dot(x_ref[...], w_ref[...], preferred_element_type=jnp.float32)
        + b_ref[...]
    ).astype(o_ref.dtype)


def img_linear(x, w_t, b):
    B = x.shape[0]
    return pl.pallas_call(
        _img_linear_kernel,
        out_shape=jax.ShapeDtypeStruct((B, MODEL_D), jnp.bfloat16),
        in_specs=[
            pl.BlockSpec((B, MODEL_D), lambda: (0, 0)),
            pl.BlockSpec((MODEL_D, MODEL_D), lambda: (0, 0)),
            pl.BlockSpec((1, MODEL_D), lambda: (0, 0)),
        ],
        out_specs=pl.BlockSpec((B, MODEL_D), lambda: (0, 0)),
    )(x, w_t, b)


# ------- Kernel 2: (folded lin_m_t+lin_m_vt4dec) + prefix dec + concat -------
def _make_fused_kernel(bc):
    def kernel(img_ref, txt_ref, wd_ref, bd_ref, wtd_ref, btd_ref, o_ref):
        # img_ref : (bc*16, 32)  bf16  -- image prefix rows of the whole chunk
        # txt_ref : (bc, 77, 512) bf16
        # wd_ref  : (32, 768) bf16, bd_ref  : (1, 768) f32   (lin_m_vt4dec)
        # wtd_ref : (512, 768) bf16, btd_ref: (1, 768) f32   (folded text map)
        # o_ref   : (bc, 93, 768) bf16
        #
        # All prefix rows of the chunk in ONE matmul: (bc*16, 32) @ (32, 768).
        pref = (
            jnp.dot(img_ref[...], wd_ref[...], preferred_element_type=jnp.float32)
            + bd_ref[...]
        ).astype(o_ref.dtype)
        for b in range(bc):  # static unroll, bc <= 8
            # prefix rows [0, 16): sublane-aligned (16 % 8 == 0), lane-dense 768
            o_ref[b, :PREFIX_LENGTH, :] = pref[
                b * PREFIX_LENGTH:(b + 1) * PREFIX_LENGTH, :
            ]
            # text rows [16, 93): single folded (77, 512) @ (512, 768) matmul
            o_ref[b, PREFIX_LENGTH:, :] = (
                jnp.dot(txt_ref[b], wtd_ref[...],
                        preferred_element_type=jnp.float32)
                + btd_ref[...]
            ).astype(o_ref.dtype)
    return kernel


def _pick_chunk(B, max_bc=8):
    # Largest divisor of B that is <= max_bc and leaves >= 2 grid steps
    # (so v7x's two TensorCores both get work); falls back to 1.
    upper = min(max_bc, max(B // 2, 1))
    for bc in range(upper, 0, -1):
        if B % bc == 0:
            return bc
    return 1


def fused_text_dec(img_prefix2d, txt, wd_t, bd, w_txt, b_txt):
    B = txt.shape[0]
    bc = _pick_chunk(B)
    return pl.pallas_call(
        _make_fused_kernel(bc),
        out_shape=jax.ShapeDtypeStruct((B, SEQ_LEN, TARGET_M_DIM), OUT_DTYPE),
        grid=(B // bc,),
        in_specs=[
            pl.BlockSpec((bc * PREFIX_LENGTH, LM_EMBED_V_DIM), lambda c: (c, 0)),
            pl.BlockSpec((bc, CLIP_MAX_LEN, MODEL_D), lambda c: (c, 0, 0)),
            pl.BlockSpec((LM_EMBED_V_DIM, TARGET_M_DIM), lambda c: (0, 0)),
            pl.BlockSpec((1, TARGET_M_DIM), lambda c: (0, 0)),
            pl.BlockSpec((MODEL_D, TARGET_M_DIM), lambda c: (0, 0)),
            pl.BlockSpec((1, TARGET_M_DIM), lambda c: (0, 0)),
        ],
        out_specs=pl.BlockSpec((bc, SEQ_LEN, TARGET_M_DIM), lambda c: (c, 0, 0)),
        compiler_params=pltpu.CompilerParams(dimension_semantics=("parallel",)),
    )(img_prefix2d, txt, wd_t, bd, w_txt, b_txt)


# ---------------------------- Forward wrapper --------------------------------
def encoder_decoder_forward(outs_v_fin, outs_t_fin, text_attention_mask, params):
    """Pallas implementation of the trainable part of EncoderDecoderModel.forward.

    outs_v_fin:          (B, 512)       CLIP visual_projection output
    outs_t_fin:          (B, 77, 512)   CLIP text_projection output
    text_attention_mask: (B, 77)
    Returns (inputs_embeds4dec_m (B, 93, 768) bf16, attention_mask (B, 93)).
    """
    B = outs_v_fin.shape[0]

    # --- one-time weight prep (in training, cache these outside the step) ---
    wv_t = params["wv_t"].astype(jnp.bfloat16)
    bv   = params["bv"].astype(jnp.float32)
    wd_t = params["wd_t"].astype(jnp.bfloat16)
    bd   = params["bd"].astype(jnp.float32)
    # Algebraic fold: lin_m_t then lin_m_vt4dec on text rows == one 512->768 map.
    wd_f32 = params["wd_t"].astype(jnp.float32)
    w_txt  = (params["wt_t"].astype(jnp.float32) @ wd_f32).astype(jnp.bfloat16)
    b_txt  = params["bt"].astype(jnp.float32) @ wd_f32 + params["bd"].astype(jnp.float32)

    # bf16 activations (no-op when the CLIP backbone already emits bf16)
    x_v = outs_v_fin.astype(jnp.bfloat16)
    x_t = outs_t_fin.astype(jnp.bfloat16)

    # lin_m_v, then view(B, prefix_length, lm_embed_v_dim) -> flattened to
    # (B*16, 32) so the fused kernel can do one prefix matmul per chunk.
    projected_image_embed = img_linear(x_v, wv_t, bv)                 # (B, 512)
    img_prefix2d = projected_image_embed.reshape(B * PREFIX_LENGTH, LM_EMBED_V_DIM)

    # folded lin_m_t + cat + lin_m_vt4dec (batch-chunked fused kernel)
    inputs_embeds4dec_m = fused_text_dec(img_prefix2d, x_t, wd_t, bd, w_txt, b_txt)

    # prefix attention mask concat (cheap glue)
    prefix_attention_mask = jnp.ones((B, PREFIX_LENGTH), dtype=text_attention_mask.dtype)
    attention_mask = jnp.concatenate([prefix_attention_mask, text_attention_mask], axis=1)

    # TODO(synk): GPT2LMHeadModel(inputs_embeds=..., attention_mask=..., labels=...)
    #   and the tokenizer-built labels have no Pallas equivalent (pretrained LM).
    return inputs_embeds4dec_m, attention_mask


# ---------------------------- Reference (plain JAX, f32, unfused) -------------
def reference_forward(outs_v_fin, outs_t_fin, params):
    B = outs_v_fin.shape[0]
    img = outs_v_fin @ params["wv_t"] + params["bv"][0]
    img = img.reshape(B, PREFIX_LENGTH, LM_EMBED_V_DIM)
    txt = outs_t_fin @ params["wt_t"] + params["bt"][0]
    cat = jnp.concatenate([img, txt], axis=1)
    return cat @ params["wd_t"] + params["bd"][0]


# ---------------------------- Main --------------------------------------------
if __name__ == "__main__":
    B = 8  # small batch (config uses 64; module dims kept)

    key = jax.random.PRNGKey(0)
    k = jax.random.split(key, 9)

    # torch Linear weight is (out, in); store the transposed (in, out) form.
    wv = 0.02 * jax.random.normal(k[0], (MODEL_D, MODEL_D), jnp.float32)             # lin_m_v
    bv = 0.02 * jax.random.normal(k[1], (MODEL_D,), jnp.float32)
    wt = 0.02 * jax.random.normal(k[2], (LM_EMBED_V_DIM, MODEL_D), jnp.float32)       # lin_m_t
    bt = 0.02 * jax.random.normal(k[3], (LM_EMBED_V_DIM,), jnp.float32)
    wd = 0.02 * jax.random.normal(k[4], (TARGET_M_DIM, LM_EMBED_V_DIM), jnp.float32)  # lin_m_vt4dec
    bd = 0.02 * jax.random.normal(k[5], (TARGET_M_DIM,), jnp.float32)

    params = {
        "wv_t": wv.T, "bv": bv.reshape(1, MODEL_D),
        "wt_t": wt.T, "bt": bt.reshape(1, LM_EMBED_V_DIM),
        "wd_t": wd.T, "bd": bd.reshape(1, TARGET_M_DIM),
    }

    # Stand-ins for the (untranslatable) CLIP backbone outputs.
    outs_v_fin = jax.random.normal(k[6], (B, MODEL_D), jnp.float32)
    outs_t_fin = jax.random.normal(k[7], (B, CLIP_MAX_LEN, MODEL_D), jnp.float32)
    text_attention_mask = jnp.ones((B, CLIP_MAX_LEN), jnp.float32)

    embeds, attn_mask = encoder_decoder_forward(
        outs_v_fin, outs_t_fin, text_attention_mask, params
    )
    embeds = jax.block_until_ready(embeds)
    attn_mask = jax.block_until_ready(attn_mask)

    assert embeds.shape == (B, SEQ_LEN, TARGET_M_DIM)
    assert attn_mask.shape == (B, SEQ_LEN)

    ref = reference_forward(outs_v_fin, outs_t_fin, params)
    err = jnp.max(jnp.abs(embeds.astype(jnp.float32) - ref))
    assert jnp.allclose(embeds.astype(jnp.float32), ref, rtol=2e-2, atol=2e-2), (
        f"mismatch vs reference, max abs err = {err}"
    )

    print("KERNEL_OK")
</pallas_src>

<mosaic_0001>
module attributes {stable_mosaic.version = 11 : i64} {
  func.func @_img_linear_kernel(%arg0: memref<8x512xbf16, #tpu.memory_space<vmem>>, %arg1: memref<512x512xbf16, #tpu.memory_space<vmem>>, %arg2: memref<1x512xf32, #tpu.memory_space<vmem>>, %arg3: memref<8x512xbf16, #tpu.memory_space<vmem>>) attributes {dimension_semantics = [], scalar_prefetch = 0 : i64, scratch_operands = 0 : i64, tpu.core_type = #tpu.core_type<tc>} {
    %c0 = arith.constant 0 : index
    %c0_0 = arith.constant 0 : index
    %0 = vector.load %arg0[%c0, %c0_0] : memref<8x512xbf16, #tpu.memory_space<vmem>>, vector<8x512xbf16>
    %c0_1 = arith.constant 0 : index
    %c0_2 = arith.constant 0 : index
    %1 = vector.load %arg1[%c0_1, %c0_2] : memref<512x512xbf16, #tpu.memory_space<vmem>>, vector<512x512xbf16>
    %cst = arith.constant dense<0.000000e+00> : vector<8x512xf32>
    %2 = tpu.matmul %0, %1, %cst {dimension_numbers = #tpu.dot_dimension_numbers<[1], [0], [0], [1], [0, 0, 1, 1], [], []>} : vector<8x512xbf16>, vector<512x512xbf16>, vector<8x512xf32> -> vector<8x512xf32>
    %c0_3 = arith.constant 0 : index
    %c0_4 = arith.constant 0 : index
    %3 = vector.load %arg2[%c0_3, %c0_4] : memref<1x512xf32, #tpu.memory_space<vmem>>, vector<1x512xf32>
    %4 = vector.broadcast %3 : vector<1x512xf32> to vector<8x512xf32>
    %5 = arith.addf %2, %4 : vector<8x512xf32>
    %6 = arith.truncf %5 : vector<8x512xf32> to vector<8x512xbf16>
    %c0_5 = arith.constant 0 : index
    %c0_6 = arith.constant 0 : index
    %7 = vector.load %arg3[%c0_5, %c0_6] : memref<8x512xbf16, #tpu.memory_space<vmem>>, vector<8x512xbf16>
    tpu.vector_store %arg3[%c0_5, %c0_6], %6 {strides = array<i32>} : memref<8x512xbf16, #tpu.memory_space<vmem>>, vector<8x512xbf16>,
    return
  }
}

</mosaic_0001>

<llo_original>
// kernel: tpu_custom_call.1
$region0: #{tpu_custom_call.1}
  #allocation0 [shape = 'u32[]', space=smem, size = 0x4, offset = 0x4, fixed_abs, tag = 'smem constant byte address 0x4 - core index']
  #allocation1 [shape = 'u32[144,128]{1,0:T(1,128)}', space=vmem, size = 0x12000, scoped, tag = 'internal scratch']
  %s0 = inlined_call_operand.hbm [shape: bf16[8,512], index: 0, kind: input, shape index: {}]
  %s1 = inlined_call_operand.hbm [shape: bf16[512,512], index: 1, kind: input, shape index: {}]
  %s2 = inlined_call_operand.vmem [shape: f32[1,512], index: 2, kind: input, shape index: {}]
  %s3 = inlined_call_operand.hbm [shape: bf16[8,512], index: 3, kind: output, shape index: {}]
  %s4 = sld [smem:[#allocation0]]
  $region30: #{tpu_custom_call.1} parent=0
    _
  %s6 = ssub.s32 1, %s4
  %s7 = scalar_select 0, %s6, %s4
  $region1: #{tpu_custom_call.1} parent=0
    #allocation2 [shape = 'u8[8192]{0}', space=vmem, size = 0x2000, scoped, tag = 'input window, operand 0, single buffered']
    #allocation3 [shape = 's32[1]{0}', space=sflag, size = 0x4, scoped, tag = 'scoped memory for tpu_custom_call.1']
    #allocation4 [shape = 's32[1]{0}', space=sflag, size = 0x4, scoped, tag = 'scoped memory for tpu_custom_call.1']
    #allocation5 [shape = 'u8[524288]{0}', space=vmem, size = 0x80000, scoped, tag = 'input window, operand 1, single buffered']
    #allocation6 [shape = 's32[1]{0}', space=sflag, size = 0x4, scoped, tag = 'scoped memory for tpu_custom_call.1']
    #allocation7 [shape = 'u8[8192]{0}', space=vmem, size = 0x2000, scoped, tag = 'output window, operand 0, single buffered']
    %8 = vsyncpa [#allocation3], 0
    %9 = vsyncpa [#allocation6], 0
    %10 = vsyncpa [#allocation4], 0
    // Predicated region
    $region2: #{tpu_custom_call.1} parent=1 // pred_check
      _
    $region3: #{tpu_custom_call.1} parent=1 // pred_check_branch
      %12 = sbr.rel (0) target = $region5
    $region4: #{tpu_custom_call.1} parent=1 // pred_region
      %s14 = ssub.s32 256, 256
      %15 = vsyncadd [#allocation3], %s14
      %s17 = sshll.u32 [#allocation2], 4
      %s18 = int_to_ptr.vmem [resolvable:$true] %s17
      %20 = dma.hbm_to_vmem [thread:$0]  %s0, 256, %s18, [#allocation3]
    $region5: #{tpu_custom_call.1} parent=1 // pred_fallthru
      _
    // Predicated region
    $region6: #{tpu_custom_call.1} parent=1 // pred_check
      _
    $region7: #{tpu_custom_call.1} parent=1 // pred_check_branch
      %22 = sbr.rel (0) target = $region9
    $region8: #{tpu_custom_call.1} parent=1 // pred_region
      %s24 = ssub.s32 16384, 16384
      %25 = vsyncadd [#allocation6], %s24
      %s26 = sshll.u32 [#allocation5], 4
      %s27 = int_to_ptr.vmem [resolvable:$true] %s26
      %32 = dma.hbm_to_vmem [thread:$0]  %s1, 16384, %s27, [#allocation6], 256, 256, 16
    $region9: #{tpu_custom_call.1} parent=1 // pred_fallthru
      _
    // Predicated region
    $region10: #{tpu_custom_call.1} parent=1 // pred_check
      _
    $region11: #{tpu_custom_call.1} parent=1 // pred_check_branch
      %34 = sbr.rel (0) target = $region13
    $region12: #{tpu_custom_call.1} parent=1 // pred_region
      _
    $region13: #{tpu_custom_call.1} parent=1 // pred_fallthru
      _
    // Predicated region
    $region14: #{tpu_custom_call.1} parent=1 // pred_check
      _
    $region15: #{tpu_custom_call.1} parent=1 // pred_check_branch
      %36 = sbr.rel (0) target = $region17
    $region16: #{tpu_custom_call.1} parent=1 // pred_region
      %37 = dma.done [#allocation3], 256
    $region17: #{tpu_custom_call.1} parent=1 // pred_fallthru
      _
    // Predicated region
    $region18: #{tpu_custom_call.1} parent=1 // pred_check
      _
    $region19: #{tpu_custom_call.1} parent=1 // pred_check_branch
      %39 = sbr.rel (0) target = $region21
    $region20: #{tpu_custom_call.1} parent=1 // pred_region
      %40 = dma.done [#allocation6], 16384
    $region21: #{tpu_custom_call.1} parent=1 // pred_fallthru
      _
    %v41 = vld [vmem:[#allocation2] sm:$0xff]
    %v42 = vld [vmem:[#allocation2 + $0x8] sm:$0xff]
    %v43 = vld [vmem:[#allocation5] sm:$0xff]
    %v44 = vld [vmem:[#allocation5 + $0x8] sm:$0xff]
    %v45 = vld [vmem:[#allocation5 + $0x10] sm:$0xff]
    %v46 = vld [vmem:[#allocation5 + $0x18] sm:$0xff]
    %v47 = vld [vmem:[#allocation5 + $0x20] sm:$0xff]
    %v48 = vld [vmem:[#allocation5 + $0x28] sm:$0xff]
    %v49 = vld [vmem:[#allocation5 + $0x30] sm:$0xff]
    %v50 = vld [vmem:[#allocation5 + $0x38] sm:$0xff]
    %v51 = vld [vmem:[#allocation5 + $0x40] sm:$0xff]
    %v52 = vld [vmem:[#allocation5 + $0x48] sm:$0xff]
    %v53 = vld [vmem:[#allocation5 + $0x50] sm:$0xff]
    %v54 = vld [vmem:[#allocation5 + $0x58] sm:$0xff]
    %v55 = vld [vmem:[#allocation5 + $0x60] sm:$0xff]
    %v56 = vld [vmem:[#allocation5 + $0x68] sm:$0xff]
    %v57 = vld [vmem:[#allocation5 + $0x70] sm:$0xff]
    %v58 = vld [vmem:[#allocation5 + $0x78] sm:$0xff]
    %v59 = vld [vmem:[#allocation5 + $0x80] sm:$0xff]
    %v60 = vld [vmem:[#allocation5 + $0x88] sm:$0xff]
    %v61 = vld [vmem:[#allocation5 + $0x90] sm:$0xff]
    %v62 = vld [vmem:[#allocation5 + $0x98] sm:$0xff]
    %v63 = vld [vmem:[#allocation5 + $0xa0] sm:$0xff]
    %v64 = vld [vmem:[#allocation5 + $0xa8] sm:$0xff]
    %v65 = vld [vmem:[#allocation5 + $0xb0] sm:$0xff]
    %v66 = vld [vmem:[#allocation5 + $0xb8] sm:$0xff]
    %v67 = vld [vmem:[#allocation5 + $0xc0] sm:$0xff]
    %v68 = vld [vmem:[#allocation5 + $0xc8] sm:$0xff]
    %v69 = vld [vmem:[#allocation5 + $0xd0] sm:$0xff]
    %v70 = vld [vmem:[#allocation5 + $0xd8] sm:$0xff]
    %v71 = vld [vmem:[#allocation5 + $0xe0] sm:$0xff]
    %v72 = vld [vmem:[#allocation5 + $0xe8] sm:$0xff]
    %v73 = vld [vmem:[#allocation5 + $0xf0] sm:$0xff]
    %v74 = vld [vmem:[#allocation5 + $0xf8] sm:$0xff]
    %v75 = vld [vmem:[#allocation5 + $0x100] sm:$0xff]
    %v76 = vld [vmem:[#allocation5 + $0x108] sm:$0xff]
    %v77 = vld [vmem:[#allocation5 + $0x110] sm:$0xff]
    %v78 = vld [vmem:[#allocation5 + $0x118] sm:$0xff]
    %v79 = vld [vmem:[#allocation5 + $0x120] sm:$0xff]
    %v80 = vld [vmem:[#allocation5 + $0x128] sm:$0xff]
    %v81 = vld [vmem:[#allocation5 + $0x130] sm:$0xff]
    %v82 = vld [vmem:[#allocation5 + $0x138] sm:$0xff]
    %v83 = vld [vmem:[#allocation5 + $0x140] sm:$0xff]
    %v84 = vld [vmem:[#allocation5 + $0x148] sm:$0xff]
    %v85 = vld [vmem:[#allocation5 + $0x150] sm:$0xff]
    %v86 = vld [vmem:[#allocation5 + $0x158] sm:$0xff]
    %v87 = vld [vmem:[#allocation5 + $0x160] sm:$0xff]
    %v88 = vld [vmem:[#allocation5 + $0x168] sm:$0xff]
    %v89 = vld [vmem:[#allocation5 + $0x170] sm:$0xff]
    %v90 = vld [vmem:[#allocation5 + $0x178] sm:$0xff]
    %v91 = vld [vmem:[#allocation5 + $0x180] sm:$0xff]
    %v92 = vld [vmem:[#allocation5 + $0x188] sm:$0xff]
    %v93 = vld [vmem:[#allocation5 + $0x190] sm:$0xff]
    %v94 = vld [vmem:[#allocation5 + $0x198] sm:$0xff]
    %v95 = vld [vmem:[#allocation5 + $0x1a0] sm:$0xff]
    %v96 = vld [vmem:[#allocation5 + $0x1a8] sm:$0xff]
    %v97 = vld [vmem:[#allocation5 + $0x1b0] sm:$0xff]
    %v98 = vld [vmem:[#allocation5 + $0x1b8] sm:$0xff]
    %v99 = vld [vmem:[#allocation5 + $0x1c0] sm:$0xff]
    %v100 = vld [vmem:[#allocation5 + $0x1c8] sm:$0xff]
    %v101 = vld [vmem:[#allocation5 + $0x1d0] sm:$0xff]
    %v102 = vld [vmem:[#allocation5 + $0x1d8] sm:$0xff]
    %v103 = vld [vmem:[#allocation5 + $0x1e0] sm:$0xff]
    %v104 = vld [vmem:[#allocation5 + $0x1e8] sm:$0xff]
    %v105 = vld [vmem:[#allocation5 + $0x1f0] sm:$0xff]
    %v106 = vld [vmem:[#allocation5 + $0x1f8] sm:$0xff]
    %v107 = vld [vmem:[#allocation5 + $0x200] sm:$0xff]
    %v108 = vld [vmem:[#allocation5 + $0x208] sm:$0xff]
    %v109 = vld [vmem:[#allocation5 + $0x210] sm:$0xff]
    %v110 = vld [vmem:[#allocation5 + $0x218] sm:$0xff]
    %v111 = vld [vmem:[#allocation5 + $0x220] sm:$0xff]
    %v112 = vld [vmem:[#allocation5 + $0x228] sm:$0xff]
    %v113 = vld [vmem:[#allocation5 + $0x230] sm:$0xff]
    %v114 = vld [vmem:[#allocation5 + $0x238] sm:$0xff]
    %v115 = vld [vmem:[#allocation5 + $0x240] sm:$0xff]
    %v116 = vld [vmem:[#allocation5 + $0x248] sm:$0xff]
    %v117 = vld [vmem:[#allocation5 + $0x250] sm:$0xff]
    %v118 = vld [vmem:[#allocation5 + $0x258] sm:$0xff]
    %v119 = vld [vmem:[#allocation5 + $0x260] sm:$0xff]
    %v120 = vld [vmem:[#allocation5 + $0x268] sm:$0xff]
    %v121 = vld [vmem:[#allocation5 + $0x270] sm:$0xff]
    %v122 = vld [vmem:[#allocation5 + $0x278] sm:$0xff]
    %v123 = vld [vmem:[#allocation5 + $0x280] sm:$0xff]
    %v124 = vld [vmem:[#allocation5 + $0x288] sm:$0xff]
    %v125 = vld [vmem:[#allocation5 + $0x290] sm:$0xff]
    %v126 = vld [vmem:[#allocation5 + $0x298] sm:$0xff]
    %v127 = vld [vmem:[#allocation5 + $0x2a0] sm:$0xff]
    %v128 = vld [vmem:[#allocation5 + $0x2a8] sm:$0xff]
    %v129 = vld [vmem:[#allocation5 + $0x2b0] sm:$0xff]
    %v130 = vld [vmem:[#allocation5 + $0x2b8] sm:$0xff]
    %v131 = vld [vmem:[#allocation5 + $0x2c0] sm:$0xff]
    %v132 = vld [vmem:[#allocation5 + $0x2c8] sm:$0xff]
    %v133 = vld [vmem:[#allocation5 + $0x2d0] sm:$0xff]
    %v134 = vld [vmem:[#allocation5 + $0x2d8] sm:$0xff]
    %v135 = vld [vmem:[#allocation5 + $0x2e0] sm:$0xff]
    %v136 = vld [vmem:[#allocation5 + $0x2e8] sm:$0xff]
    %v137 = vld [vmem:[#allocation5 + $0x2f0] sm:$0xff]
    %v138 = vld [vmem:[#allocation5 + $0x2f8] sm:$0xff]
    %v139 = vld [vmem:[#allocation5 + $0x300] sm:$0xff]
    %v140 = vld [vmem:[#allocation5 + $0x308] sm:$0xff]
    %v141 = vld [vmem:[#allocation5 + $0x310] sm:$0xff]
    %v142 = vld [vmem:[#allocation5 + $0x318] sm:$0xff]
    %v143 = vld [vmem:[#allocation5 + $0x320] sm:$0xff]
    %v144 = vld [vmem:[#allocation5 + $0x328] sm:$0xff]
    %v145 = vld [vmem:[#allocation5 + $0x330] sm:$0xff]
    %v146 = vld [vmem:[#allocation5 + $0x338] sm:$0xff]
    %v147 = vld [vmem:[#allocation5 + $0x340] sm:$0xff]
    %v148 = vld [vmem:[#allocation5 + $0x348] sm:$0xff]
    %v149 = vld [vmem:[#allocation5 + $0x350] sm:$0xff]
    %v150 = vld [vmem:[#allocation5 + $0x358] sm:$0xff]
    %v151 = vld [vmem:[#allocation5 + $0x360] sm:$0xff]
    %v152 = vld [vmem:[#allocation5 + $0x368] sm:$0xff]
    %v153 = vld [vmem:[#allocation5 + $0x370] sm:$0xff]
    %v154 = vld [vmem:[#allocation5 + $0x378] sm:$0xff]
    %v155 = vld [vmem:[#allocation5 + $0x380] sm:$0xff]
    %v156 = vld [vmem:[#allocation5 + $0x388] sm:$0xff]
    %v157 = vld [vmem:[#allocation5 + $0x390] sm:$0xff]
    %v158 = vld [vmem:[#allocation5 + $0x398] sm:$0xff]
    %v159 = vld [vmem:[#allocation5 + $0x3a0] sm:$0xff]
    %v160 = vld [vmem:[#allocation5 + $0x3a8] sm:$0xff]
    %v161 = vld [vmem:[#allocation5 + $0x3b0] sm:$0xff]
    %v162 = vld [vmem:[#allocation5 + $0x3b8] sm:$0xff]
    %v163 = vld [vmem:[#allocation5 + $0x3c0] sm:$0xff]
    %v164 = vld [vmem:[#allocation5 + $0x3c8] sm:$0xff]
    %v165 = vld [vmem:[#allocation5 + $0x3d0] sm:$0xff]
    %v166 = vld [vmem:[#allocation5 + $0x3d8] sm:$0xff]
    %v167 = vld [vmem:[#allocation5 + $0x3e0] sm:$0xff]
    %v168 = vld [vmem:[#allocation5 + $0x3e8] sm:$0xff]
    %v169 = vld [vmem:[#allocation5 + $0x3f0] sm:$0xff]
    %v170 = vld [vmem:[#allocation5 + $0x3f8] sm:$0xff]
    %v171 = vld [vmem:[%s2] sm:$0xf]
    %v173 = vlaneseq
    %v174 = vshrl.u32 %v173, 7
    %v175 = vsub.s32 0, %v174
    %v176 = vrot.slane %v171, %v175
    %v177 = vlaneseq
    %v178 = vshrl.u32 %v177, 7
    %v179 = vsub.s32 1, %v178
    %v180 = vrot.slane %v171, %v179
    %v181 = vlaneseq
    %v182 = vshrl.u32 %v181, 7
    %v183 = vsub.s32 2, %v182
    %v184 = vrot.slane %v171, %v183
    %v185 = vlaneseq
    %v186 = vshrl.u32 %v185, 7
    %v187 = vsub.s32 3, %v186
    %v188 = vrot.slane %v171, %v187
    %v195 = vunpack.c.l.b16 %v41
    %v196 = vunpack.c.h.b16 %v41
    %v197 = vunpack.c.l.b16 %v42
    %v198 = vunpack.c.h.b16 %v42
    %v199 = vpack.c.b16 %v195, %v195
    %v200 = vpack.c.b16 %v196, %v196
    %v201 = vpack.c.b16 %v197, %v197
    %v202 = vpack.c.b16 %v198, %v198
    %v335 = vunpack.c.l.b16 %v43
    %v336 = vunpack.c.h.b16 %v43
    %v337 = vunpack.c.l.b16 %v44
    %v338 = vunpack.c.h.b16 %v44
    %v339 = vunpack.c.l.b16 %v45
    %v340 = vunpack.c.h.b16 %v45
    %v341 = vunpack.c.l.b16 %v46
    %v342 = vunpack.c.h.b16 %v46
    %v343 = vunpack.c.l.b16 %v47
    %v344 = vunpack.c.h.b16 %v47
    %v345 = vunpack.c.l.b16 %v48
    %v346 = vunpack.c.h.b16 %v48
    %v347 = vunpack.c.l.b16 %v49
    %v348 = vunpack.c.h.b16 %v49
    %v349 = vunpack.c.l.b16 %v50
    %v350 = vunpack.c.h.b16 %v50
    %v351 = vunpack.c.l.b16 %v51
    %v352 = vunpack.c.h.b16 %v51
    %v353 = vunpack.c.l.b16 %v52
    %v354 = vunpack.c.h.b16 %v52
    %v355 = vunpack.c.l.b16 %v53
    %v356 = vunpack.c.h.b16 %v53
    %v357 = vunpack.c.l.b16 %v54
    %v358 = vunpack.c.h.b16 %v54
    %v359 = vunpack.c.l.b16 %v55
    %v360 = vunpack.c.h.b16 %v55
    %v361 = vunpack.c.l.b16 %v56
    %v362 = vunpack.c.h.b16 %v56
    %v363 = vunpack.c.l.b16 %v57
    %v364 = vunpack.c.h.b16 %v57
    %v365 = vunpack.c.l.b16 %v58
    %v366 = vunpack.c.h.b16 %v58
    %v367 = vunpack.c.l.b16 %v59
    %v368 = vunpack.c.h.b16 %v59
    %v369 = vunpack.c.l.b16 %v60
    %v370 = vunpack.c.h.b16 %v60
    %v371 = vunpack.c.l.b16 %v61
    %v372 = vunpack.c.h.b16 %v61
    %v373 = vunpack.c.l.b16 %v62
    %v374 = vunpack.c.h.b16 %v62
    %v375 = vunpack.c.l.b16 %v63
    %v376 = vunpack.c.h.b16 %v63
    %v377 = vunpack.c.l.b16 %v64
    %v378 = vunpack.c.h.b16 %v64
    %v379 = vunpack.c.l.b16 %v65
    %v380 = vunpack.c.h.b16 %v65
    %v381 = vunpack.c.l.b16 %v66
    %v382 = vunpack.c.h.b16 %v66
    %v383 = vunpack.c.l.b16 %v67
    %v384 = vunpack.c.h.b16 %v67
    %v385 = vunpack.c.l.b16 %v68
    %v386 = vunpack.c.h.b16 %v68
    %v387 = vunpack.c.l.b16 %v69
    %v388 = vunpack.c.h.b16 %v69
    %v389 = vunpack.c.l.b16 %v70
    %v390 = vunpack.c.h.b16 %v70
    %v391 = vunpack.c.l.b16 %v71
    %v392 = vunpack.c.h.b16 %v71
    %v393 = vunpack.c.l.b16 %v72
    %v394 = vunpack.c.h.b16 %v72
    %v395 = vunpack.c.l.b16 %v73
    %v396 = vunpack.c.h.b16 %v73
    %v397 = vunpack.c.l.b16 %v74
    %v398 = vunpack.c.h.b16 %v74
    %v399 = vunpack.c.l.b16 %v75
    %v400 = vunpack.c.h.b16 %v75
    %v401 = vunpack.c.l.b16 %v76
    %v402 = vunpack.c.h.b16 %v76
    %v403 = vunpack.c.l.b16 %v77
    %v404 = vunpack.c.h.b16 %v77
    %v405 = vunpack.c.l.b16 %v78
    %v406 = vunpack.c.h.b16 %v78
    %v407 = vunpack.c.l.b16 %v79
    %v408 = vunpack.c.h.b16 %v79
    %v409 = vunpack.c.l.b16 %v80
    %v410 = vunpack.c.h.b16 %v80
    %v411 = vunpack.c.l.b16 %v81
    %v412 = vunpack.c.h.b16 %v81
    %v413 = vunpack.c.l.b16 %v82
    %v414 = vunpack.c.h.b16 %v82
    %v415 = vunpack.c.l.b16 %v83
    %v416 = vunpack.c.h.b16 %v83
    %v417 = vunpack.c.l.b16 %v84
    %v418 = vunpack.c.h.b16 %v84
    %v419 = vunpack.c.l.b16 %v85
    %v420 = vunpack.c.h.b16 %v85
    %v421 = vunpack.c.l.b16 %v86
    %v422 = vunpack.c.h.b16 %v86
    %v423 = vunpack.c.l.b16 %v87
    %v424 = vunpack.c.h.b16 %v87
    %v425 = vunpack.c.l.b16 %v88
    %v426 = vunpack.c.h.b16 %v88
    %v427 = vunpack.c.l.b16 %v89
    %v428 = vunpack.c.h.b16 %v89
    %v429 = vunpack.c.l.b16 %v90
    %v430 = vunpack.c.h.b16 %v90
    %v431 = vunpack.c.l.b16 %v91
    %v432 = vunpack.c.h.b16 %v91
    %v433 = vunpack.c.l.b16 %v92
    %v434 = vunpack.c.h.b16 %v92
    %v435 = vunpack.c.l.b16 %v93
    %v436 = vunpack.c.h.b16 %v93
    %v437 = vunpack.c.l.b16 %v94
    %v438 = vunpack.c.h.b16 %v94
    %v439 = vunpack.c.l.b16 %v95
    %v440 = vunpack.c.h.b16 %v95
    %v441 = vunpack.c.l.b16 %v96
    %v442 = vunpack.c.h.b16 %v96
    %v443 = vunpack.c.l.b16 %v97
    %v444 = vunpack.c.h.b16 %v97
    %v445 = vunpack.c.l.b16 %v98
    %v446 = vunpack.c.h.b16 %v98
    %v447 = vunpack.c.l.b16 %v99
    %v448 = vunpack.c.h.b16 %v99
    %v449 = vunpack.c.l.b16 %v100
    %v450 = vunpack.c.h.b16 %v100
    %v451 = vunpack.c.l.b16 %v101
    %v452 = vunpack.c.h.b16 %v101
    %v453 = vunpack.c.l.b16 %v102
    %v454 = vunpack.c.h.b16 %v102
    %v455 = vunpack.c.l.b16 %v103
    %v456 = vunpack.c.h.b16 %v103
    %v457 = vunpack.c.l.b16 %v104
    %v458 = vunpack.c.h.b16 %v104
    %v459 = vunpack.c.l.b16 %v105
    %v460 = vunpack.c.h.b16 %v105
    %v461 = vunpack.c.l.b16 %v106
    %v462 = vunpack.c.h.b16 %v106
    %v463 = vunpack.c.l.b16 %v107
    %v464 = vunpack.c.h.b16 %v107
    %v465 = vunpack.c.l.b16 %v108
    %v466 = vunpack.c.h.b16 %v108
    %v467 = vunpack.c.l.b16 %v109
    %v468 = vunpack.c.h.b16 %v109
    %v469 = vunpack.c.l.b16 %v110
    %v470 = vunpack.c.h.b16 %v110
    %v471 = vunpack.c.l.b16 %v111
    %v472 = vunpack.c.h.b16 %v111
    %v473 = vunpack.c.l.b16 %v112
    %v474 = vunpack.c.h.b16 %v112
    %v475 = vunpack.c.l.b16 %v113
    %v476 = vunpack.c.h.b16 %v113
    %v477 = vunpack.c.l.b16 %v114
    %v478 = vunpack.c.h.b16 %v114
    %v479 = vunpack.c.l.b16 %v115
    %v480 = vunpack.c.h.b16 %v115
    %v481 = vunpack.c.l.b16 %v116
    %v482 = vunpack.c.h.b16 %v116
    %v483 = vunpack.c.l.b16 %v117
    %v484 = vunpack.c.h.b16 %v117
    %v485 = vunpack.c.l.b16 %v118
    %v486 = vunpack.c.h.b16 %v118
    %v487 = vunpack.c.l.b16 %v119
    %v488 = vunpack.c.h.b16 %v119
    %v489 = vunpack.c.l.b16 %v120
    %v490 = vunpack.c.h.b16 %v120
    %v491 = vunpack.c.l.b16 %v121
    %v492 = vunpack.c.h.b16 %v121
    %v493 = vunpack.c.l.b16 %v122
    %v494 = vunpack.c.h.b16 %v122
    %v495 = vunpack.c.l.b16 %v123
    %v496 = vunpack.c.h.b16 %v123
    %v497 = vunpack.c.l.b16 %v124
    %v498 = vunpack.c.h.b16 %v124
    %v499 = vunpack.c.l.b16 %v125
    %v500 = vunpack.c.h.b16 %v125
    %v501 = vunpack.c.l.b16 %v126
    %v502 = vunpack.c.h.b16 %v126
    %v503 = vunpack.c.l.b16 %v127
    %v504 = vunpack.c.h.b16 %v127
    %v505 = vunpack.c.l.b16 %v128
    %v506 = vunpack.c.h.b16 %v128
    %v507 = vunpack.c.l.b16 %v129
    %v508 = vunpack.c.h.b16 %v129
    %v509 = vunpack.c.l.b16 %v130
    %v510 = vunpack.c.h.b16 %v130
    %v511 = vunpack.c.l.b16 %v131
    %v512 = vunpack.c.h.b16 %v131
    %v513 = vunpack.c.l.b16 %v132
    %v514 = vunpack.c.h.b16 %v132
    %v515 = vunpack.c.l.b16 %v133
    %v516 = vunpack.c.h.b16 %v133
    %v517 = vunpack.c.l.b16 %v134
    %v518 = vunpack.c.h.b16 %v134
    %v519 = vunpack.c.l.b16 %v135
    %v520 = vunpack.c.h.b16 %v135
    %v521 = vunpack.c.l.b16 %v136
    %v522 = vunpack.c.h.b16 %v136
    %v523 = vunpack.c.l.b16 %v137
    %v524 = vunpack.c.h.b16 %v137
    %v525 = vunpack.c.l.b16 %v138
    %v526 = vunpack.c.h.b16 %v138
    %v527 = vunpack.c.l.b16 %v139
    %v528 = vunpack.c.h.b16 %v139
    %v529 = vunpack.c.l.b16 %v140
    %v530 = vunpack.c.h.b16 %v140
    %v531 = vunpack.c.l.b16 %v141
    %v532 = vunpack.c.h.b16 %v141
    %v533 = vunpack.c.l.b16 %v142
    %v534 = vunpack.c.h.b16 %v142
    %v535 = vunpack.c.l.b16 %v143
    %v536 = vunpack.c.h.b16 %v143
    %v537 = vunpack.c.l.b16 %v144
    %v538 = vunpack.c.h.b16 %v144
    %v539 = vunpack.c.l.b16 %v145
    %v540 = vunpack.c.h.b16 %v145
    %v541 = vunpack.c.l.b16 %v146
    %v542 = vunpack.c.h.b16 %v146
    %v543 = vunpack.c.l.b16 %v147
    %v544 = vunpack.c.h.b16 %v147
    %v545 = vunpack.c.l.b16 %v148
    %v546 = vunpack.c.h.b16 %v148
    %v547 = vunpack.c.l.b16 %v149
    %v548 = vunpack.c.h.b16 %v149
    %v549 = vunpack.c.l.b16 %v150
    %v550 = vunpack.c.h.b16 %v150
    %v551 = vunpack.c.l.b16 %v151
    %v552 = vunpack.c.h.b16 %v151
    %v553 = vunpack.c.l.b16 %v152
    %v554 = vunpack.c.h.b16 %v152
    %v555 = vunpack.c.l.b16 %v153
    %v556 = vunpack.c.h.b16 %v153
    %v557 = vunpack.c.l.b16 %v154
    %v558 = vunpack.c.h.b16 %v154
    %v559 = vunpack.c.l.b16 %v155
    %v560 = vunpack.c.h.b16 %v155
    %v561 = vunpack.c.l.b16 %v156
    %v562 = vunpack.c.h.b16 %v156
    %v563 = vunpack.c.l.b16 %v157
    %v564 = vunpack.c.h.b16 %v157
    %v565 = vunpack.c.l.b16 %v158
    %v566 = vunpack.c.h.b16 %v158
    %v567 = vunpack.c.l.b16 %v159
    %v568 = vunpack.c.h.b16 %v159
    %v569 = vunpack.c.l.b16 %v160
    %v570 = vunpack.c.h.b16 %v160
    %v571 = vunpack.c.l.b16 %v161
    %v572 = vunpack.c.h.b16 %v161
    %v573 = vunpack.c.l.b16 %v162
    %v574 = vunpack.c.h.b16 %v162
    %v575 = vunpack.c.l.b16 %v163
    %v576 = vunpack.c.h.b16 %v163
    %v577 = vunpack.c.l.b16 %v164
    %v578 = vunpack.c.h.b16 %v164
    %v579 = vunpack.c.l.b16 %v165
    %v580 = vunpack.c.h.b16 %v165
    %v581 = vunpack.c.l.b16 %v166
    %v582 = vunpack.c.h.b16 %v166
    %v583 = vunpack.c.l.b16 %v167
    %v584 = vunpack.c.h.b16 %v167
    %v585 = vunpack.c.l.b16 %v168
    %v586 = vunpack.c.h.b16 %v168
    %v587 = vunpack.c.l.b16 %v169
    %v588 = vunpack.c.h.b16 %v169
    %v589 = vunpack.c.l.b16 %v170
    %v590 = vunpack.c.h.b16 %v170
    %v591 = vpack.c.b16 %v339, %v335
    %v592 = vpack.c.b16 %v340, %v336
    %v593 = vpack.c.b16 %v341, %v337
    %v594 = vpack.c.b16 %v342, %v338
    %v595 = vpack.c.b16 %v347, %v343
    %v596 = vpack.c.b16 %v348, %v344
    %v597 = vpack.c.b16 %v349, %v345
    %v598 = vpack.c.b16 %v350, %v346
    %v599 = vpack.c.b16 %v355, %v351
    %v600 = vpack.c.b16 %v356, %v352
    %v601 = vpack.c.b16 %v357, %v353
    %v602 = vpack.c.b16 %v358, %v354
    %v603 = vpack.c.b16 %v363, %v359
    %v604 = vpack.c.b16 %v364, %v360
    %v605 = vpack.c.b16 %v365, %v361
    %v606 = vpack.c.b16 %v366, %v362
    %v607 = vpack.c.b16 %v371, %v367
    %v608 = vpack.c.b16 %v372, %v368
    %v609 = vpack.c.b16 %v373, %v369
    %v610 = vpack.c.b16 %v374, %v370
    %v611 = vpack.c.b16 %v379, %v375
    %v612 = vpack.c.b16 %v380, %v376
    %v613 = vpack.c.b16 %v381, %v377
    %v614 = vpack.c.b16 %v382, %v378
    %v615 = vpack.c.b16 %v387, %v383
    %v616 = vpack.c.b16 %v388, %v384
    %v617 = vpack.c.b16 %v389, %v385
    %v618 = vpack.c.b16 %v390, %v386
    %v619 = vpack.c.b16 %v395, %v391
    %v620 = vpack.c.b16 %v396, %v392
    %v621 = vpack.c.b16 %v397, %v393
    %v622 = vpack.c.b16 %v398, %v394
    %v623 = vpack.c.b16 %v403, %v399
    %v624 = vpack.c.b16 %v404, %v400
    %v625 = vpack.c.b16 %v405, %v401
    %v626 = vpack.c.b16 %v406, %v402
    %v627 = vpack.c.b16 %v411, %v407
    %v628 = vpack.c.b16 %v412, %v408
    %v629 = vpack.c.b16 %v413, %v409
    %v630 = vpack.c.b16 %v414, %v410
    %v631 = vpack.c.b16 %v419, %v415
    %v632 = vpack.c.b16 %v420, %v416
    %v633 = vpack.c.b16 %v421, %v417
    %v634 = vpack.c.b16 %v422, %v418
    %v635 = vpack.c.b16 %v427, %v423
    %v636 = vpack.c.b16 %v428, %v424
    %v637 = vpack.c.b16 %v429, %v425
    %v638 = vpack.c.b16 %v430, %v426
    %v639 = vpack.c.b16 %v435, %v431
    %v640 = vpack.c.b16 %v436, %v432
    %v641 = vpack.c.b16 %v437, %v433
    %v642 = vpack.c.b16 %v438, %v434
    %v643 = vpack.c.b16 %v443, %v439
    %v644 = vpack.c.b16 %v444, %v440
    %v645 = vpack.c.b16 %v445, %v441
    %v646 = vpack.c.b16 %v446, %v442
    %v647 = vpack.c.b16 %v451, %v447
    %v648 = vpack.c.b16 %v452, %v448
    %v649 = vpack.c.b16 %v453, %v449
    %v650 = vpack.c.b16 %v454, %v450
    %v651 = vpack.c.b16 %v459, %v455
    %v652 = vpack.c.b16 %v460, %v456
    %v653 = vpack.c.b16 %v461, %v457
    %v654 = vpack.c.b16 %v462, %v458
    %v655 = vpack.c.b16 %v467, %v463
    %v656 = vpack.c.b16 %v468, %v464
    %v657 = vpack.c.b16 %v469, %v465
    %v658 = vpack.c.b16 %v470, %v466
    %v659 = vpack.c.b16 %v475, %v471
    %v660 = vpack.c.b16 %v476, %v472
    %v661 = vpack.c.b16 %v477, %v473
    %v662 = vpack.c.b16 %v478, %v474
    %v663 = vpack.c.b16 %v483, %v479
    %v664 = vpack.c.b16 %v484, %v480
    %v665 = vpack.c.b16 %v485, %v481
    %v666 = vpack.c.b16 %v486, %v482
    %v667 = vpack.c.b16 %v491, %v487
    %v668 = vpack.c.b16 %v492, %v488
    %v669 = vpack.c.b16 %v493, %v489
    %v670 = vpack.c.b16 %v494, %v490
    %v671 = vpack.c.b16 %v499, %v495
    %v672 = vpack.c.b16 %v500, %v496
    %v673 = vpack.c.b16 %v501, %v497
    %v674 = vpack.c.b16 %v502, %v498
    %v675 = vpack.c.b16 %v507, %v503
    %v676 = vpack.c.b16 %v508, %v504
    %v677 = vpack.c.b16 %v509, %v505
    %v678 = vpack.c.b16 %v510, %v506
    %v679 = vpack.c.b16 %v515, %v511
    %v680 = vpack.c.b16 %v516, %v512
    %v681 = vpack.c.b16 %v517, %v513
    %v682 = vpack.c.b16 %v518, %v514
    %v683 = vpack.c.b16 %v523, %v519
    %v684 = vpack.c.b16 %v524, %v520
    %v685 = vpack.c.b16 %v525, %v521
    %v686 = vpack.c.b16 %v526, %v522
    %v687 = vpack.c.b16 %v531, %v527
    %v688 = vpack.c.b16 %v532, %v528
    %v689 = vpack.c.b16 %v533, %v529
    %v690 = vpack.c.b16 %v534, %v530
    %v691 = vpack.c.b16 %v539, %v535
    %v692 = vpack.c.b16 %v540, %v536
    %v693 = vpack.c.b16 %v541, %v537
    %v694 = vpack.c.b16 %v542, %v538
    %v695 = vpack.c.b16 %v547, %v543
    %v696 = vpack.c.b16 %v548, %v544
    %v697 = vpack.c.b16 %v549, %v545
    %v698 = vpack.c.b16 %v550, %v546
    %v699 = vpack.c.b16 %v555, %v551
    %v700 = vpack.c.b16 %v556, %v552
    %v701 = vpack.c.b16 %v557, %v553
    %v702 = vpack.c.b16 %v558, %v554
    %v703 = vpack.c.b16 %v563, %v559
    %v704 = vpack.c.b16 %v564, %v560
    %v705 = vpack.c.b16 %v565, %v561
    %v706 = vpack.c.b16 %v566, %v562
    %v707 = vpack.c.b16 %v571, %v567
    %v708 = vpack.c.b16 %v572, %v568
    %v709 = vpack.c.b16 %v573, %v569
    %v710 = vpack.c.b16 %v574, %v570
    %v711 = vpack.c.b16 %v579, %v575
    %v712 = vpack.c.b16 %v580, %v576
    %v713 = vpack.c.b16 %v581, %v577
    %v714 = vpack.c.b16 %v582, %v578
    %v715 = vpack.c.b16 %v587, %v583
    %v716 = vpack.c.b16 %v588, %v584
    %v717 = vpack.c.b16 %v589, %v585
    %v718 = vpack.c.b16 %v590, %v586
    %847 = vmatprep.subr.bf16.mxu0 %v592
    %848 = vmatpush1.bf16.msra.mxu0 %v591
    %849 = vmatprep.subr.bf16.mxu0 %v596
    %850 = vmatpush1.bf16.msra.mxu0 %v595
    %851 = vmatprep.subr.bf16.mxu0 %v600
    %852 = vmatpush1.bf16.msra.mxu0 %v599
    %853 = vmatprep.subr.bf16.mxu0 %v604
    %854 = vmatpush1.bf16.msra.mxu0 %v603
    %855 = vmatprep.subr.bf16.mxu0 %v608
    %856 = vmatpush1.bf16.msra.mxu0 %v607
    %857 = vmatprep.subr.bf16.mxu0 %v612
    %858 = vmatpush1.bf16.msra.mxu0 %v611
    %859 = vmatprep.subr.bf16.mxu0 %v616
    %860 = vmatpush1.bf16.msra.mxu0 %v615
    %861 = vmatprep.subr.bf16.mxu0 %v620
    %862 = vmatpush1.bf16.msra.mxu0 %v619
    %863 = vmatprep.subr.bf16.mxu0 %v624
    %864 = vmatpush1.bf16.msra.mxu0 %v623
    %865 = vmatprep.subr.bf16.mxu0 %v628
    %866 = vmatpush1.bf16.msra.mxu0 %v627
    %867 = vmatprep.subr.bf16.mxu0 %v632
    %868 = vmatpush1.bf16.msra.mxu0 %v631
    %869 = vmatprep.subr.bf16.mxu0 %v636
    %870 = vmatpush1.bf16.msra.mxu0 %v635
    %871 = vmatprep.subr.bf16.mxu0 %v640
    %872 = vmatpush1.bf16.msra.mxu0 %v639
    %873 = vmatprep.subr.bf16.mxu0 %v644
    %874 = vmatpush1.bf16.msra.mxu0 %v643
    %875 = vmatprep.subr.bf16.mxu0 %v648
    %876 = vmatpush1.bf16.msra.mxu0 %v647
    %877 = vmatprep.subr.bf16.mxu0 %v652
    %878 = vmatpush1.bf16.msra.mxu0 %v651
    %879 = vmatprep.mubr.bf16.mxu0 %v200
    %880 = vmatmul.mubr.bf16.gmra.mrb[0].mxu0 %v199
    %v881 = vpop.f32.mrb[0].mxu0
    %v882 = vadd.f32 %v176, %v881
    %v883 = vpop.f32.mrb[0].mxu0
    %v884 = vadd.f32 %v180, %v883
    %v885 = vpop.f32.mrb[0].mxu0
    %v886 = vpop.f32.mrb[0].mxu0
    %887 = vdwg.mxu0
    %888 = vmatprep.subr.bf16.mxu0 %v656
    %889 = vmatpush1.bf16.msra.mxu0 %v655
    %890 = vmatprep.subr.bf16.mxu0 %v660
    %891 = vmatpush1.bf16.msra.mxu0 %v659
    %892 = vmatprep.subr.bf16.mxu0 %v664
    %893 = vmatpush1.bf16.msra.mxu0 %v663
    %894 = vmatprep.subr.bf16.mxu0 %v668
    %895 = vmatpush1.bf16.msra.mxu0 %v667
    %896 = vmatprep.subr.bf16.mxu0 %v672
    %897 = vmatpush1.bf16.msra.mxu0 %v671
    %898 = vmatprep.subr.bf16.mxu0 %v676
    %899 = vmatpush1.bf16.msra.mxu0 %v675
    %900 = vmatprep.subr.bf16.mxu0 %v680
    %901 = vmatpush1.bf16.msra.mxu0 %v679
    %902 = vmatprep.subr.bf16.mxu0 %v684
    %903 = vmatpush1.bf16.msra.mxu0 %v683
    %904 = vmatprep.subr.bf16.mxu0 %v688
    %905 = vmatpush1.bf16.msra.mxu0 %v687
    %906 = vmatprep.subr.bf16.mxu0 %v692
    %907 = vmatpush1.bf16.msra.mxu0 %v691
    %908 = vmatprep.subr.bf16.mxu0 %v696
    %909 = vmatpush1.bf16.msra.mxu0 %v695
    %910 = vmatprep.subr.bf16.mxu0 %v700
    %911 = vmatpush1.bf16.msra.mxu0 %v699
    %912 = vmatprep.subr.bf16.mxu0 %v704
    %913 = vmatpush1.bf16.msra.mxu0 %v703
    %914 = vmatprep.subr.bf16.mxu0 %v708
    %915 = vmatpush1.bf16.msra.mxu0 %v707
    %916 = vmatprep.subr.bf16.mxu0 %v712
    %917 = vmatpush1.bf16.msra.mxu0 %v711
    %918 = vmatprep.subr.bf16.mxu0 %v716
    %919 = vmatpush1.bf16.msra.mxu0 %v715
    %920 = vmatprep.mubr.bf16.mxu0 %v202
    %921 = vmatmul.mubr.bf16.gmra.mrb[0].mxu0 %v201
    %v922 = vpop.f32.mrb[0].mxu0
    %v923 = vadd.f32 %v882, %v922
    %v924 = vpop.f32.mrb[0].mxu0
    %v925 = vadd.f32 %v884, %v924
    %v926 = vpop.f32.mrb[0].mxu0
    %v927 = vpop.f32.mrb[0].mxu0
    %928 = vdwg.mxu0
    %929 = vmatprep.subr.bf16.mxu0 %v594
    %930 = vmatpush1.bf16.msra.mxu0 %v593
    %931 = vmatprep.subr.bf16.mxu0 %v598
    %932 = vmatpush1.bf16.msra.mxu0 %v597
    %933 = vmatprep.subr.bf16.mxu0 %v602
    %934 = vmatpush1.bf16.msra.mxu0 %v601
    %935 = vmatprep.subr.bf16.mxu0 %v606
    %936 = vmatpush1.bf16.msra.mxu0 %v605
    %937 = vmatprep.subr.bf16.mxu0 %v610
    %938 = vmatpush1.bf16.msra.mxu0 %v609
    %939 = vmatprep.subr.bf16.mxu0 %v614
    %940 = vmatpush1.bf16.msra.mxu0 %v613
    %941 = vmatprep.subr.bf16.mxu0 %v618
    %942 = vmatpush1.bf16.msra.mxu0 %v617
    %943 = vmatprep.subr.bf16.mxu0 %v622
    %944 = vmatpush1.bf16.msra.mxu0 %v621
    %945 = vmatprep.subr.bf16.mxu0 %v626
    %946 = vmatpush1.bf16.msra.mxu0 %v625
    %947 = vmatprep.subr.bf16.mxu0 %v630
    %948 = vmatpush1.bf16.msra.mxu0 %v629
    %949 = vmatprep.subr.bf16.mxu0 %v634
    %950 = vmatpush1.bf16.msra.mxu0 %v633
    %951 = vmatprep.subr.bf16.mxu0 %v638
    %952 = vmatpush1.bf16.msra.mxu0 %v637
    %953 = vmatprep.subr.bf16.mxu0 %v642
    %954 = vmatpush1.bf16.msra.mxu0 %v641
    %955 = vmatprep.subr.bf16.mxu0 %v646
    %956 = vmatpush1.bf16.msra.mxu0 %v645
    %957 = vmatprep.subr.bf16.mxu0 %v650
    %958 = vmatpush1.bf16.msra.mxu0 %v649
    %959 = vmatprep.subr.bf16.mxu0 %v654
    %960 = vmatpush1.bf16.msra.mxu0 %v653
    %961 = vmatprep.mubr.bf16.mxu0 %v200
    %962 = vmatmul.mubr.bf16.gmra.mrb[0].mxu0 %v199
    %v963 = vpop.f32.mrb[0].mxu0
    %v964 = vadd.f32 %v184, %v963
    %v965 = vpop.f32.mrb[0].mxu0
    %v966 = vadd.f32 %v188, %v965
    %v967 = vpop.f32.mrb[0].mxu0
    %v968 = vpop.f32.mrb[0].mxu0
    %969 = vdwg.mxu0
    %970 = vmatprep.subr.bf16.mxu0 %v658
    %971 = vmatpush1.bf16.msra.mxu0 %v657
    %972 = vmatprep.subr.bf16.mxu0 %v662
    %973 = vmatpush1.bf16.msra.mxu0 %v661
    %974 = vmatprep.subr.bf16.mxu0 %v666
    %975 = vmatpush1.bf16.msra.mxu0 %v665
    %976 = vmatprep.subr.bf16.mxu0 %v670
    %977 = vmatpush1.bf16.msra.mxu0 %v669
    %978 = vmatprep.subr.bf16.mxu0 %v674
    %979 = vmatpush1.bf16.msra.mxu0 %v673
    %980 = vmatprep.subr.bf16.mxu0 %v678
    %981 = vmatpush1.bf16.msra.mxu0 %v677
    %982 = vmatprep.subr.bf16.mxu0 %v682
    %983 = vmatpush1.bf16.msra.mxu0 %v681
    %984 = vmatprep.subr.bf16.mxu0 %v686
    %985 = vmatpush1.bf16.msra.mxu0 %v685
    %986 = vmatprep.subr.bf16.mxu0 %v690
    %987 = vmatpush1.bf16.msra.mxu0 %v689
    %988 = vmatprep.subr.bf16.mxu0 %v694
    %989 = vmatpush1.bf16.msra.mxu0 %v693
    %990 = vmatprep.subr.bf16.mxu0 %v698
    %991 = vmatpush1.bf16.msra.mxu0 %v697
    %992 = vmatprep.subr.bf16.mxu0 %v702
    %993 = vmatpush1.bf16.msra.mxu0 %v701
    %994 = vmatprep.subr.bf16.mxu0 %v706
    %995 = vmatpush1.bf16.msra.mxu0 %v705
    %996 = vmatprep.subr.bf16.mxu0 %v710
    %997 = vmatpush1.bf16.msra.mxu0 %v709
    %998 = vmatprep.subr.bf16.mxu0 %v714
    %999 = vmatpush1.bf16.msra.mxu0 %v713
    %1000 = vmatprep.subr.bf16.mxu0 %v718
    %1001 = vmatpush1.bf16.msra.mxu0 %v717
    %1002 = vmatprep.mubr.bf16.mxu0 %v202
    %1003 = vmatmul.mubr.bf16.gmra.mrb[0].mxu0 %v201
    %v1004 = vpop.f32.mrb[0].mxu0
    %v1005 = vadd.f32 %v964, %v1004
    %v1006 = vpop.f32.mrb[0].mxu0
    %v1007 = vadd.f32 %v966, %v1006
    %v1008 = vpop.f32.mrb[0].mxu0
    %v1009 = vpop.f32.mrb[0].mxu0
    %1010 = vdwg.mxu0
    %v1011 = vpack.c.bf16 %v923, %v923
    %v1012 = vpack.c.bf16 %v925, %v925
    %v1013 = vpack.c.bf16 %v1005, %v1005
    %v1014 = vpack.c.bf16 %v1007, %v1007
    %v1019 = vunpack.c.l.b16 %v1011
    %v1020 = vunpack.c.l.b16 %v1012
    %v1021 = vunpack.c.l.b16 %v1013
    %v1022 = vunpack.c.l.b16 %v1014
    %v1023 = vpack.c.b16 %v1020, %v1019
    %v1024 = vpack.c.b16 %v1022, %v1021
    %1027 = vst [vmem:[#allocation7] sm:$0xff] %v1023
    %1028 = vst [vmem:[#allocation7 + $0x8] sm:$0xff] %v1024
    // Predicated region
    $region22: #{tpu_custom_call.1} parent=1 // pred_check
      _
    $region23: #{tpu_custom_call.1} parent=1 // pred_check_branch
      %1030 = sbr.rel (0) target = $region25
    $region24: #{tpu_custom_call.1} parent=1 // pred_region
      %s1032 = ssub.s32 256, 256
      %1033 = vsyncadd [#allocation4], %s1032
      %s1035 = sshll.u32 [#allocation7], 4
      %s1036 = int_to_ptr.vmem [resolvable:$true] %s1035
      %1038 = dma.vmem_to_hbm [thread:$0]  %s1036, 256, %s3, [#allocation4]
    $region25: #{tpu_custom_call.1} parent=1 // pred_fallthru
      _
    // Predicated region
    $region26: #{tpu_custom_call.1} parent=1 // pred_check
      _
    $region27: #{tpu_custom_call.1} parent=1 // pred_check_branch
      %1040 = sbr.rel (0) target = $region29
    $region28: #{tpu_custom_call.1} parent=1 // pred_region
      %1041 = dma.done [#allocation4], 256
    $region29: #{tpu_custom_call.1} parent=1 // pred_fallthru
      _
    %1042 = vsyncpa [#allocation3], 1
    %1043 = vsyncpa [#allocation6], 1
    %1044 = vsyncpa [#allocation4], 1

</llo_original>
